<compile_context>
chip_gen: v7x
topology: tpu7x:2x2x1
jax: 0.10.0
libtpu: 0.0.40
codegen_flags: <defaults>
</compile_context>

<pallas_src>
import functools

import jax
import jax.numpy as jnp
from jax import lax
from jax.experimental import pallas as pl
from jax.experimental.pallas import tpu as pltpu


def _mhsa_kernel(x_ref, wqkv_ref, bqkv_ref, wout_ref, bout_ref, o_ref,
                 qkv_scr, acc_ref, *, num_heads, head_dim, dim):
    """Grid = (batch, head).  Per batch row: fused QKV once, then one head of
    attention + its partial output projection per grid step."""
    C = dim
    H = num_heads
    hd = head_dim
    h = pl.program_id(1)

    # ---- Once per batch row: fused QKV projection + head-major relayout ----
    @pl.when(h == 0)
    def _init():
        # (N, C) bf16 @ (C, 3C) bf16 -> f32 accumulation; f32 bias add.
        qkv = jnp.dot(x_ref[...], wqkv_ref[...],
                      preferred_element_type=jnp.float32) + bqkv_ref[...]
        qkv_bf = qkv.astype(jnp.bfloat16)          # f32 slab dies in this block
        # One explicit (static) relayout into head-major scratch so the hot
        # per-head path below only does leading-axis indexing.
        for si in range(3):
            for hh in range(H):
                lo = si * C + hh * hd
                qkv_scr[si * H + hh] = qkv_bf[:, lo:lo + hd]
        # Initialize the output-projection accumulator with the output bias.
        acc_ref[...] = jnp.broadcast_to(bout_ref[...], acc_ref.shape)

    # ---- One head of scaled dot-product attention (scale folded into Q) ----
    q = qkv_scr[h]                                  # (N, hd) bf16, pre-scaled
    k = qkv_scr[H + h]                              # (N, hd) bf16
    v = qkv_scr[2 * H + h]                          # (N, hd) bf16

    # s = q @ k^T via dot_general contracting last dims (no explicit transpose).
    s = lax.dot_general(q, k, (((1,), (1,)), ((), ())),
                        preferred_element_type=jnp.float32)    # (N, N) f32

    # Max-stabilized softmax in f32; reciprocal on the EUP.
    m = jnp.max(s, axis=-1, keepdims=True)
    p = jnp.exp(s - m)
    attn = p * pl.reciprocal(jnp.sum(p, axis=-1, keepdims=True), approx=True)

    pv = jnp.dot(attn.astype(jnp.bfloat16), v,
                 preferred_element_type=jnp.float32)           # (N, hd) f32

    # ---- Per-head partial output projection, f32 accumulation ----
    row = pl.multiple_of(h * hd, hd)
    w_out_h = wout_ref[pl.ds(row, hd), :]                      # (hd, C) bf16
    acc_ref[...] += jnp.dot(pv.astype(jnp.bfloat16), w_out_h,
                            preferred_element_type=jnp.float32)

    # ---- After the last head: write the (lane-dense) output block ----
    @pl.when(h == H - 1)
    def _finalize():
        o_ref[...] = acc_ref[...].astype(o_ref.dtype)


def multi_head_self_attention(x, w_qkv, b_qkv, w_out, b_out, *, num_heads):
    """x: (B, N, C); w_qkv: (C, 3C); b_qkv: (3C,); w_out: (C, C); b_out: (C,)."""
    B, N, C = x.shape
    assert C % num_heads == 0
    head_dim = C // num_heads
    scale = 1.0 / (head_dim ** 0.5)

    # Fold the softmax scale into the Q columns of the QKV projection.
    col_scale = jnp.concatenate([jnp.full((C,), scale, jnp.float32),
                                 jnp.ones((2 * C,), jnp.float32)])
    w_qkv_bf = (w_qkv.astype(jnp.float32) * col_scale[None, :]).astype(jnp.bfloat16)
    b_qkv2 = (b_qkv.astype(jnp.float32) * col_scale).reshape(1, 3 * C)
    w_out_bf = w_out.astype(jnp.bfloat16)
    b_out2 = b_out.reshape(1, C).astype(jnp.float32)

    # bf16 activations into the kernel (half the DMA / VMEM for x).
    x_bf = x.astype(jnp.bfloat16)

    kernel = functools.partial(_mhsa_kernel, num_heads=num_heads,
                               head_dim=head_dim, dim=C)

    # Weights/biases: whole-array VMEM residents (single copy, no pipelining).
    resident = pl.BlockSpec(memory_space=pltpu.MemorySpace.VMEM)

    return pl.pallas_call(
        kernel,
        out_shape=jax.ShapeDtypeStruct((B, N, C), x.dtype),
        grid_spec=pltpu.PrefetchScalarGridSpec(
            num_scalar_prefetch=0,
            grid=(B, num_heads),                     # heads innermost, sequential
            in_specs=[
                pl.BlockSpec((None, N, C), lambda b, h: (b, 0, 0)),  # x (bf16)
                resident,                                            # w_qkv (bf16, Q-scaled)
                resident,                                            # b_qkv (f32, Q-scaled)
                resident,                                            # w_out (bf16)
                resident,                                            # b_out (f32)
            ],
            out_specs=pl.BlockSpec((None, N, C), lambda b, h: (b, 0, 0)),
            scratch_shapes=[
                pltpu.VMEM((3 * num_heads, N, head_dim), jnp.bfloat16),  # head-major QKV
                pltpu.VMEM((N, C), jnp.float32),                         # out-proj accumulator
            ],
        ),
        compiler_params=pltpu.CompilerParams(
            # Batch axis split across TensorCores; head axis carries the
            # resident QKV scratch + accumulator so it must stay sequential.
            dimension_semantics=("parallel", "arbitrary"),
            vmem_limit_bytes=48 * 1024 * 1024,   # leaves headroom under v7x's 64 MiB
        ),
    )(x_bf, w_qkv_bf, b_qkv2, w_out_bf, b_out2)


def _reference(x, w_qkv, b_qkv, w_out, b_out, *, num_heads):
    """Pure-JAX f32 reference mirroring the PyTorch forward pass."""
    B, N, C = x.shape
    hd = C // num_heads
    qkv = x @ w_qkv + b_qkv                                   # (B, N, 3C)
    qkv = qkv.reshape(B, N, 3, num_heads, hd).transpose(2, 0, 3, 1, 4)
    q, k, v = qkv[0], qkv[1], qkv[2]                          # (B, H, N, hd)
    attn = jnp.einsum("bhnd,bhmd->bhnm", q, k) / (hd ** 0.5)
    attn = jax.nn.softmax(attn, axis=-1)
    out = jnp.einsum("bhnm,bhmd->bhnd", attn, v)              # (B, H, N, hd)
    out = out.transpose(0, 2, 1, 3).reshape(B, N, C)
    return out @ w_out + b_out


if __name__ == "__main__":
    B, N, C, num_heads = 2, 8, 32, 4

    key = jax.random.PRNGKey(0)
    kx, k1, k2, k3, k4 = jax.random.split(key, 5)

    x = jax.random.normal(kx, (B, N, C), dtype=jnp.float32)

    # Deterministic parameter init (Linear weights stored transposed: (in, out)).
    w_qkv = jax.random.normal(k1, (C, 3 * C), dtype=jnp.float32) * 0.02
    b_qkv = jax.random.normal(k2, (3 * C,), dtype=jnp.float32) * 0.02
    w_out = jax.random.normal(k3, (C, C), dtype=jnp.float32) * 0.02
    b_out = jax.random.normal(k4, (C,), dtype=jnp.float32) * 0.02

    y = multi_head_self_attention(x, w_qkv, b_qkv, w_out, b_out,
                                  num_heads=num_heads)
    y = jax.block_until_ready(y)

    y_ref = _reference(x, w_qkv, b_qkv, w_out, b_out, num_heads=num_heads)
    assert y.shape == (B, N, C)
    # Tolerance loosened for bf16 matmul inputs + approx reciprocal
    # (accumulation and softmax remain f32).
    assert jnp.allclose(y, y_ref, atol=1e-2, rtol=1e-2), "mismatch vs reference"

    print("KERNEL_OK")
</pallas_src>

<mosaic_0001>
module attributes {stable_mosaic.version = 11 : i64} {
  func.func @_mhsa_kernel(%arg0: i32, %arg1: i32, %arg2: memref<1x8x32xbf16, #tpu.memory_space<vmem>>, %arg3: memref<32x96xbf16, #tpu.memory_space<vmem>>, %arg4: memref<1x96xf32, #tpu.memory_space<vmem>>, %arg5: memref<32x32xbf16, #tpu.memory_space<vmem>>, %arg6: memref<1x32xf32, #tpu.memory_space<vmem>>, %arg7: memref<1x8x32xf32, #tpu.memory_space<vmem>>, %arg8: memref<12x8x8xbf16, #tpu.memory_space<vmem>>, %arg9: memref<8x32xf32, #tpu.memory_space<vmem>>) attributes {dimension_semantics = [#tpu.dimension_semantics<parallel>, #tpu.dimension_semantics<arbitrary>], iteration_bounds = array<i64: 2, 4>, scalar_prefetch = 0 : i64, scratch_operands = 2 : i64, tpu.core_type = #tpu.core_type<tc>, window_params = [{transform_indices = @transform_0, window_bounds = array<i64: 1, 8, 32>}, {pipeline_mode = #tpu.pipeline_mode<synchronous>, transform_indices = @transform_1, window_bounds = array<i64: 32, 96>}, {pipeline_mode = #tpu.pipeline_mode<synchronous>, transform_indices = @transform_2, window_bounds = array<i64: 1, 96>}, {pipeline_mode = #tpu.pipeline_mode<synchronous>, transform_indices = @transform_3, window_bounds = array<i64: 32, 32>}, {pipeline_mode = #tpu.pipeline_mode<synchronous>, transform_indices = @transform_4, window_bounds = array<i64: 1, 32>}, {transform_indices = @transform_5, window_bounds = array<i64: 1, 8, 32>}]} {
    %c0_i32 = arith.constant 0 : i32
    %0 = arith.cmpi eq, %arg1, %c0_i32 : i32
    %1 = arith.extui %0 : i1 to i32
    %c0_i32_0 = arith.constant 0 : i32
    %2 = arith.cmpi ne, %1, %c0_i32_0 : i32
    scf.if %2 {
      %c0_17 = arith.constant 0 : index
      %c0_18 = arith.constant 0 : index
      %c0_19 = arith.constant 0 : index
      %39 = vector.load %arg2[%c0_17, %c0_18, %c0_19] : memref<1x8x32xbf16, #tpu.memory_space<vmem>>, vector<1x8x32xbf16>
      %40 = vector.shape_cast %39 : vector<1x8x32xbf16> to vector<8x32xbf16>
      %c0_20 = arith.constant 0 : index
      %c0_21 = arith.constant 0 : index
      %41 = vector.load %arg3[%c0_20, %c0_21] : memref<32x96xbf16, #tpu.memory_space<vmem>>, vector<32x96xbf16>
      %cst_22 = arith.constant dense<0.000000e+00> : vector<8x96xf32>
      %42 = tpu.matmul %40, %41, %cst_22 {dimension_numbers = #tpu.dot_dimension_numbers<[1], [0], [0], [1], [0, 0, 1, 1], [], []>} : vector<8x32xbf16>, vector<32x96xbf16>, vector<8x96xf32> -> vector<8x96xf32>
      %c0_23 = arith.constant 0 : index
      %c0_24 = arith.constant 0 : index
      %43 = vector.load %arg4[%c0_23, %c0_24] : memref<1x96xf32, #tpu.memory_space<vmem>>, vector<1x96xf32>
      %44 = vector.broadcast %43 : vector<1x96xf32> to vector<8x96xf32>
      %45 = arith.addf %42, %44 : vector<8x96xf32>
      %46 = arith.truncf %45 : vector<8x96xf32> to vector<8x96xbf16>
      %47 = vector.extract_strided_slice %46 {offsets = [0, 0], sizes = [8, 8], strides = [1, 1]} : vector<8x96xbf16> to vector<8x8xbf16>
      %c0_25 = arith.constant 0 : index
      %c0_26 = arith.constant 0 : index
      %c0_27 = arith.constant 0 : index
      %48 = vector.load %arg8[%c0_25, %c0_26, %c0_27] : memref<12x8x8xbf16, #tpu.memory_space<vmem>>, vector<1x8x8xbf16>
      %49 = vector.shape_cast %48 : vector<1x8x8xbf16> to vector<8x8xbf16>
      %50 = vector.shape_cast %47 : vector<8x8xbf16> to vector<1x8x8xbf16>
      tpu.vector_store %arg8[%c0_25, %c0_26, %c0_27], %50 {strides = array<i32>} : memref<12x8x8xbf16, #tpu.memory_space<vmem>>, vector<1x8x8xbf16>,
      %51 = vector.extract_strided_slice %46 {offsets = [0, 8], sizes = [8, 8], strides = [1, 1]} : vector<8x96xbf16> to vector<8x8xbf16>
      %c1 = arith.constant 1 : index
      %c0_28 = arith.constant 0 : index
      %c0_29 = arith.constant 0 : index
      %52 = vector.load %arg8[%c1, %c0_28, %c0_29] : memref<12x8x8xbf16, #tpu.memory_space<vmem>>, vector<1x8x8xbf16>
      %53 = vector.shape_cast %52 : vector<1x8x8xbf16> to vector<8x8xbf16>
      %54 = vector.shape_cast %51 : vector<8x8xbf16> to vector<1x8x8xbf16>
      tpu.vector_store %arg8[%c1, %c0_28, %c0_29], %54 {strides = array<i32>} : memref<12x8x8xbf16, #tpu.memory_space<vmem>>, vector<1x8x8xbf16>,
      %55 = vector.extract_strided_slice %46 {offsets = [0, 16], sizes = [8, 8], strides = [1, 1]} : vector<8x96xbf16> to vector<8x8xbf16>
      %c2 = arith.constant 2 : index
      %c0_30 = arith.constant 0 : index
      %c0_31 = arith.constant 0 : index
      %56 = vector.load %arg8[%c2, %c0_30, %c0_31] : memref<12x8x8xbf16, #tpu.memory_space<vmem>>, vector<1x8x8xbf16>
      %57 = vector.shape_cast %56 : vector<1x8x8xbf16> to vector<8x8xbf16>
      %58 = vector.shape_cast %55 : vector<8x8xbf16> to vector<1x8x8xbf16>
      tpu.vector_store %arg8[%c2, %c0_30, %c0_31], %58 {strides = array<i32>} : memref<12x8x8xbf16, #tpu.memory_space<vmem>>, vector<1x8x8xbf16>,
      %59 = vector.extract_strided_slice %46 {offsets = [0, 24], sizes = [8, 8], strides = [1, 1]} : vector<8x96xbf16> to vector<8x8xbf16>
      %c3 = arith.constant 3 : index
      %c0_32 = arith.constant 0 : index
      %c0_33 = arith.constant 0 : index
      %60 = vector.load %arg8[%c3, %c0_32, %c0_33] : memref<12x8x8xbf16, #tpu.memory_space<vmem>>, vector<1x8x8xbf16>
      %61 = vector.shape_cast %60 : vector<1x8x8xbf16> to vector<8x8xbf16>
      %62 = vector.shape_cast %59 : vector<8x8xbf16> to vector<1x8x8xbf16>
      tpu.vector_store %arg8[%c3, %c0_32, %c0_33], %62 {strides = array<i32>} : memref<12x8x8xbf16, #tpu.memory_space<vmem>>, vector<1x8x8xbf16>,
      %63 = vector.extract_strided_slice %46 {offsets = [0, 32], sizes = [8, 8], strides = [1, 1]} : vector<8x96xbf16> to vector<8x8xbf16>
      %c4 = arith.constant 4 : index
      %c0_34 = arith.constant 0 : index
      %c0_35 = arith.constant 0 : index
      %64 = vector.load %arg8[%c4, %c0_34, %c0_35] : memref<12x8x8xbf16, #tpu.memory_space<vmem>>, vector<1x8x8xbf16>
      %65 = vector.shape_cast %64 : vector<1x8x8xbf16> to vector<8x8xbf16>
      %66 = vector.shape_cast %63 : vector<8x8xbf16> to vector<1x8x8xbf16>
      tpu.vector_store %arg8[%c4, %c0_34, %c0_35], %66 {strides = array<i32>} : memref<12x8x8xbf16, #tpu.memory_space<vmem>>, vector<1x8x8xbf16>,
      %67 = vector.extract_strided_slice %46 {offsets = [0, 40], sizes = [8, 8], strides = [1, 1]} : vector<8x96xbf16> to vector<8x8xbf16>
      %c5 = arith.constant 5 : index
      %c0_36 = arith.constant 0 : index
      %c0_37 = arith.constant 0 : index
      %68 = vector.load %arg8[%c5, %c0_36, %c0_37] : memref<12x8x8xbf16, #tpu.memory_space<vmem>>, vector<1x8x8xbf16>
      %69 = vector.shape_cast %68 : vector<1x8x8xbf16> to vector<8x8xbf16>
      %70 = vector.shape_cast %67 : vector<8x8xbf16> to vector<1x8x8xbf16>
      tpu.vector_store %arg8[%c5, %c0_36, %c0_37], %70 {strides = array<i32>} : memref<12x8x8xbf16, #tpu.memory_space<vmem>>, vector<1x8x8xbf16>,
      %71 = vector.extract_strided_slice %46 {offsets = [0, 48], sizes = [8, 8], strides = [1, 1]} : vector<8x96xbf16> to vector<8x8xbf16>
      %c6 = arith.constant 6 : index
      %c0_38 = arith.constant 0 : index
      %c0_39 = arith.constant 0 : index
      %72 = vector.load %arg8[%c6, %c0_38, %c0_39] : memref<12x8x8xbf16, #tpu.memory_space<vmem>>, vector<1x8x8xbf16>
      %73 = vector.shape_cast %72 : vector<1x8x8xbf16> to vector<8x8xbf16>
      %74 = vector.shape_cast %71 : vector<8x8xbf16> to vector<1x8x8xbf16>
      tpu.vector_store %arg8[%c6, %c0_38, %c0_39], %74 {strides = array<i32>} : memref<12x8x8xbf16, #tpu.memory_space<vmem>>, vector<1x8x8xbf16>,
      %75 = vector.extract_strided_slice %46 {offsets = [0, 56], sizes = [8, 8], strides = [1, 1]} : vector<8x96xbf16> to vector<8x8xbf16>
      %c7 = arith.constant 7 : index
      %c0_40 = arith.constant 0 : index
      %c0_41 = arith.constant 0 : index
      %76 = vector.load %arg8[%c7, %c0_40, %c0_41] : memref<12x8x8xbf16, #tpu.memory_space<vmem>>, vector<1x8x8xbf16>
      %77 = vector.shape_cast %76 : vector<1x8x8xbf16> to vector<8x8xbf16>
      %78 = vector.shape_cast %75 : vector<8x8xbf16> to vector<1x8x8xbf16>
      tpu.vector_store %arg8[%c7, %c0_40, %c0_41], %78 {strides = array<i32>} : memref<12x8x8xbf16, #tpu.memory_space<vmem>>, vector<1x8x8xbf16>,
      %79 = vector.extract_strided_slice %46 {offsets = [0, 64], sizes = [8, 8], strides = [1, 1]} : vector<8x96xbf16> to vector<8x8xbf16>
      %c8 = arith.constant 8 : index
      %c0_42 = arith.constant 0 : index
      %c0_43 = arith.constant 0 : index
      %80 = vector.load %arg8[%c8, %c0_42, %c0_43] : memref<12x8x8xbf16, #tpu.memory_space<vmem>>, vector<1x8x8xbf16>
      %81 = vector.shape_cast %80 : vector<1x8x8xbf16> to vector<8x8xbf16>
      %82 = vector.shape_cast %79 : vector<8x8xbf16> to vector<1x8x8xbf16>
      tpu.vector_store %arg8[%c8, %c0_42, %c0_43], %82 {strides = array<i32>} : memref<12x8x8xbf16, #tpu.memory_space<vmem>>, vector<1x8x8xbf16>,
      %83 = vector.extract_strided_slice %46 {offsets = [0, 72], sizes = [8, 8], strides = [1, 1]} : vector<8x96xbf16> to vector<8x8xbf16>
      %c9 = arith.constant 9 : index
      %c0_44 = arith.constant 0 : index
      %c0_45 = arith.constant 0 : index
      %84 = vector.load %arg8[%c9, %c0_44, %c0_45] : memref<12x8x8xbf16, #tpu.memory_space<vmem>>, vector<1x8x8xbf16>
      %85 = vector.shape_cast %84 : vector<1x8x8xbf16> to vector<8x8xbf16>
      %86 = vector.shape_cast %83 : vector<8x8xbf16> to vector<1x8x8xbf16>
      tpu.vector_store %arg8[%c9, %c0_44, %c0_45], %86 {strides = array<i32>} : memref<12x8x8xbf16, #tpu.memory_space<vmem>>, vector<1x8x8xbf16>,
      %87 = vector.extract_strided_slice %46 {offsets = [0, 80], sizes = [8, 8], strides = [1, 1]} : vector<8x96xbf16> to vector<8x8xbf16>
      %c10 = arith.constant 10 : index
      %c0_46 = arith.constant 0 : index
      %c0_47 = arith.constant 0 : index
      %88 = vector.load %arg8[%c10, %c0_46, %c0_47] : memref<12x8x8xbf16, #tpu.memory_space<vmem>>, vector<1x8x8xbf16>
      %89 = vector.shape_cast %88 : vector<1x8x8xbf16> to vector<8x8xbf16>
      %90 = vector.shape_cast %87 : vector<8x8xbf16> to vector<1x8x8xbf16>
      tpu.vector_store %arg8[%c10, %c0_46, %c0_47], %90 {strides = array<i32>} : memref<12x8x8xbf16, #tpu.memory_space<vmem>>, vector<1x8x8xbf16>,
      %91 = vector.extract_strided_slice %46 {offsets = [0, 88], sizes = [8, 8], strides = [1, 1]} : vector<8x96xbf16> to vector<8x8xbf16>
      %c11 = arith.constant 11 : index
      %c0_48 = arith.constant 0 : index
      %c0_49 = arith.constant 0 : index
      %92 = vector.load %arg8[%c11, %c0_48, %c0_49] : memref<12x8x8xbf16, #tpu.memory_space<vmem>>, vector<1x8x8xbf16>
      %93 = vector.shape_cast %92 : vector<1x8x8xbf16> to vector<8x8xbf16>
      %94 = vector.shape_cast %91 : vector<8x8xbf16> to vector<1x8x8xbf16>
      tpu.vector_store %arg8[%c11, %c0_48, %c0_49], %94 {strides = array<i32>} : memref<12x8x8xbf16, #tpu.memory_space<vmem>>, vector<1x8x8xbf16>,
      %c0_50 = arith.constant 0 : index
      %c0_51 = arith.constant 0 : index
      %95 = vector.load %arg6[%c0_50, %c0_51] : memref<1x32xf32, #tpu.memory_space<vmem>>, vector<1x32xf32>
      %96 = vector.shape_cast %95 : vector<1x32xf32> to vector<1x32xf32>
      %97 = vector.broadcast %96 : vector<1x32xf32> to vector<8x32xf32>
      %c0_52 = arith.constant 0 : index
      %c0_53 = arith.constant 0 : index
      %98 = vector.load %arg9[%c0_52, %c0_53] : memref<8x32xf32, #tpu.memory_space<vmem>>, vector<8x32xf32>
      tpu.vector_store %arg9[%c0_52, %c0_53], %97 {strides = array<i32>} : memref<8x32xf32, #tpu.memory_space<vmem>>, vector<8x32xf32>,
    } else {
    }
    %3 = arith.index_cast %arg1 : i32 to index
    %c0 = arith.constant 0 : index
    %c0_1 = arith.constant 0 : index
    %4 = vector.load %arg8[%3, %c0, %c0_1] : memref<12x8x8xbf16, #tpu.memory_space<vmem>>, vector<1x8x8xbf16>
    %5 = vector.shape_cast %4 : vector<1x8x8xbf16> to vector<8x8xbf16>
    %c4_i32 = arith.constant 4 : i32
    %6 = arith.addi %c4_i32, %arg1 : i32
    %7 = arith.index_cast %6 : i32 to index
    %c0_2 = arith.constant 0 : index
    %c0_3 = arith.constant 0 : index
    %8 = vector.load %arg8[%7, %c0_2, %c0_3] : memref<12x8x8xbf16, #tpu.memory_space<vmem>>, vector<1x8x8xbf16>
    %9 = vector.shape_cast %8 : vector<1x8x8xbf16> to vector<8x8xbf16>
    %c8_i32 = arith.constant 8 : i32
    %10 = arith.addi %c8_i32, %arg1 : i32
    %11 = arith.index_cast %10 : i32 to index
    %c0_4 = arith.constant 0 : index
    %c0_5 = arith.constant 0 : index
    %12 = vector.load %arg8[%11, %c0_4, %c0_5] : memref<12x8x8xbf16, #tpu.memory_space<vmem>>, vector<1x8x8xbf16>
    %13 = vector.shape_cast %12 : vector<1x8x8xbf16> to vector<8x8xbf16>
    %cst = arith.constant dense<0.000000e+00> : vector<8x8xf32>
    %14 = tpu.matmul %5, %9, %cst {dimension_numbers = #tpu.dot_dimension_numbers<[1], [1], [0], [0], [0, 0, 1, 0], [], []>} : vector<8x8xbf16>, vector<8x8xbf16>, vector<8x8xf32> -> vector<8x8xf32>
    %cst_6 = arith.constant dense<0xFF800000> : vector<8xf32>
    %15 = vector.multi_reduction <maximumf>, %14, %cst_6 [1] : vector<8x8xf32> to vector<8xf32>
    %16 = vector.shape_cast %15 : vector<8xf32> to vector<8x1xf32>
    %17 = vector.broadcast %16 : vector<8x1xf32> to vector<8x8xf32>
    %18 = arith.subf %14, %17 : vector<8x8xf32>
    %19 = math.exp %18 : vector<8x8xf32>
    %cst_7 = arith.constant dense<0.000000e+00> : vector<8xf32>
    %20 = vector.multi_reduction <add>, %19, %cst_7 [1] : vector<8x8xf32> to vector<8xf32>
    %21 = vector.shape_cast %20 : vector<8xf32> to vector<8x1xf32>
    %22 = tpu.reciprocal %21 {approx = true} : vector<8x1xf32> -> vector<8x1xf32>
    %23 = vector.broadcast %22 : vector<8x1xf32> to vector<8x8xf32>
    %24 = arith.mulf %19, %23 : vector<8x8xf32>
    %25 = arith.truncf %24 : vector<8x8xf32> to vector<8x8xbf16>
    %cst_8 = arith.constant dense<0.000000e+00> : vector<8x8xf32>
    %26 = tpu.matmul %25, %13, %cst_8 {dimension_numbers = #tpu.dot_dimension_numbers<[1], [0], [0], [1], [0, 0, 1, 1], [], []>} : vector<8x8xbf16>, vector<8x8xbf16>, vector<8x8xf32> -> vector<8x8xf32>
    %c8_i32_9 = arith.constant 8 : i32
    %27 = arith.muli %arg1, %c8_i32_9 : i32
    %28 = tpu.assume_multiple %27, 8 : i32
    %29 = arith.index_cast %28 : i32 to index
    %c0_10 = arith.constant 0 : index
    %30 = vector.load %arg5[%29, %c0_10] : memref<32x32xbf16, #tpu.memory_space<vmem>>, vector<8x32xbf16>
    %c0_11 = arith.constant 0 : index
    %c0_12 = arith.constant 0 : index
    %31 = vector.load %arg9[%c0_11, %c0_12] : memref<8x32xf32, #tpu.memory_space<vmem>>, vector<8x32xf32>
    %32 = arith.truncf %26 : vector<8x8xf32> to vector<8x8xbf16>
    %cst_13 = arith.constant dense<0.000000e+00> : vector<8x32xf32>
    %33 = tpu.matmul %32, %30, %cst_13 {dimension_numbers = #tpu.dot_dimension_numbers<[1], [0], [0], [1], [0, 0, 1, 1], [], []>} : vector<8x8xbf16>, vector<8x32xbf16>, vector<8x32xf32> -> vector<8x32xf32>
    %34 = arith.addf %31, %33 : vector<8x32xf32>
    %c0_14 = arith.constant 0 : index
    %c0_15 = arith.constant 0 : index
    %35 = vector.load %arg9[%c0_14, %c0_15] : memref<8x32xf32, #tpu.memory_space<vmem>>, vector<8x32xf32>
    tpu.vector_store %arg9[%c0_14, %c0_15], %34 {strides = array<i32>} : memref<8x32xf32, #tpu.memory_space<vmem>>, vector<8x32xf32>,
    %c3_i32 = arith.constant 3 : i32
    %36 = arith.cmpi eq, %arg1, %c3_i32 : i32
    %37 = arith.extui %36 : i1 to i32
    %c0_i32_16 = arith.constant 0 : i32
    %38 = arith.cmpi ne, %37, %c0_i32_16 : i32
    scf.if %38 {
      %c0_17 = arith.constant 0 : index
      %c0_18 = arith.constant 0 : index
      %39 = vector.load %arg9[%c0_17, %c0_18] : memref<8x32xf32, #tpu.memory_space<vmem>>, vector<8x32xf32>
      %c0_19 = arith.constant 0 : index
      %c0_20 = arith.constant 0 : index
      %c0_21 = arith.constant 0 : index
      %40 = vector.load %arg7[%c0_19, %c0_20, %c0_21] : memref<1x8x32xf32, #tpu.memory_space<vmem>>, vector<1x8x32xf32>
      %41 = vector.shape_cast %40 : vector<1x8x32xf32> to vector<8x32xf32>
      %42 = vector.shape_cast %39 : vector<8x32xf32> to vector<1x8x32xf32>
      tpu.vector_store %arg7[%c0_19, %c0_20, %c0_21], %42 {strides = array<i32>} : memref<1x8x32xf32, #tpu.memory_space<vmem>>, vector<1x8x32xf32>,
    } else {
    }
    return
  }
  func.func @transform_0(%arg0: i32, %arg1: i32) -> (i32, i32, i32) {
    %c0_i32 = arith.constant 0 : i32
    %c0_i32_0 = arith.constant 0 : i32
    %c0_i32_1 = arith.constant 0 : i32
    return %arg0, %c0_i32, %c0_i32_0 : i32, i32, i32
  }
  func.func @transform_1(%arg0: i32, %arg1: i32) -> (i32, i32) {
    %c0_i32 = arith.constant 0 : i32
    %c0_i32_0 = arith.constant 0 : i32
    %c0_i32_1 = arith.constant 0 : i32
    return %c0_i32, %c0_i32_0 : i32, i32
  }
  func.func @transform_2(%arg0: i32, %arg1: i32) -> (i32, i32) {
    %c0_i32 = arith.constant 0 : i32
    %c0_i32_0 = arith.constant 0 : i32
    %c0_i32_1 = arith.constant 0 : i32
    return %c0_i32, %c0_i32_0 : i32, i32
  }
  func.func @transform_3(%arg0: i32, %arg1: i32) -> (i32, i32) {
    %c0_i32 = arith.constant 0 : i32
    %c0_i32_0 = arith.constant 0 : i32
    %c0_i32_1 = arith.constant 0 : i32
    return %c0_i32, %c0_i32_0 : i32, i32
  }
  func.func @transform_4(%arg0: i32, %arg1: i32) -> (i32, i32) {
    %c0_i32 = arith.constant 0 : i32
    %c0_i32_0 = arith.constant 0 : i32
    %c0_i32_1 = arith.constant 0 : i32
    return %c0_i32, %c0_i32_0 : i32, i32
  }
  func.func @transform_5(%arg0: i32, %arg1: i32) -> (i32, i32, i32) {
    %c0_i32 = arith.constant 0 : i32
    %c0_i32_0 = arith.constant 0 : i32
    %c0_i32_1 = arith.constant 0 : i32
    return %arg0, %c0_i32, %c0_i32_0 : i32, i32, i32
  }
}

</mosaic_0001>

<llo_original>
// kernel: tpu_custom_call.1
$region0: #{tpu_custom_call.1}
  #allocation0 [shape = 'u32[]', space=smem, size = 0x4, offset = 0x4, fixed_abs, tag = 'smem constant byte address 0x4 - core index']
  #allocation1 [shape = 'u32[144,128]{1,0:T(1,128)}', space=vmem, size = 0x12000, scoped, tag = 'internal scratch']
  #allocation2 [shape = 'bf16[12,8,8]{2,1,0:T(8,128)(2,1)}', space=vmem, size = 0x6000, scoped, tag = 'scratch operand']
  #allocation3 [shape = 'f32[8,32]{1,0:T(8,128)}', space=vmem, size = 0x1000, scoped, tag = 'scratch operand']
  %s0 = inlined_call_operand.hbm [shape: bf16[2,8,32], index: 0, kind: input, shape index: {}]
  %s1 = inlined_call_operand.hbm [shape: bf16[32,96], index: 1, kind: input, shape index: {}]
  %s2 = inlined_call_operand.vmem [shape: f32[1,96], index: 2, kind: input, shape index: {}]
  %s3 = inlined_call_operand.hbm [shape: bf16[32,32], index: 3, kind: input, shape index: {}]
  %s4 = inlined_call_operand.vmem [shape: f32[1,32], index: 4, kind: input, shape index: {}]
  %s5 = inlined_call_operand.hbm [shape: f32[2,8,32], index: 5, kind: output, shape index: {}]
  %s6 = sld [smem:[#allocation0]]
  $region73: #{tpu_custom_call.1} parent=0
    _
  %s8 = ssub.s32 1, %s6
  %s9 = scalar_select 0, %s8, %s6
  $region1: #{tpu_custom_call.1} parent=0
    #allocation4 [shape = 'u8[4096]{0}', space=vmem, size = 0x1000, scoped, tag = 'input window, operand 0']
    #allocation5 [shape = 's32[2]{0}', space=sflag, size = 0x8, scoped, tag = 'scoped memory for tpu_custom_call.1']
    #allocation6 [shape = 's32[2]{0}', space=sflag, size = 0x8, scoped, tag = 'scoped memory for tpu_custom_call.1']
    #allocation7 [shape = 'u8[8192]{0}', space=vmem, size = 0x2000, scoped, tag = 'input window, operand 1, single buffered']
    #allocation8 [shape = 's32[1]{0}', space=sflag, size = 0x4, scoped, tag = 'scoped memory for tpu_custom_call.1']
    #allocation9 [shape = 'u8[8192]{0}', space=vmem, size = 0x2000, scoped, tag = 'input window, operand 3, single buffered']
    #allocation10 [shape = 'u8[8192]{0}', space=vmem, size = 0x2000, scoped, tag = 'output window, operand 0']
    %10 = vsyncpa [#allocation5], 0
    %s11 = scalar_lea.sflag [#allocation5], 1
    %12 = vsyncpa %s11, 0
    %13 = vsyncpa [#allocation8], 0
    %14 = vsyncpa [#allocation6], 0
    %s15 = scalar_lea.sflag [#allocation6], 1
    %16 = vsyncpa %s15, 0
    loop: start=0, step=1, limit=10
    $region2: #{tpu_custom_call.1} parent=1 // loop_pre_header
      _
    $region3: #{tpu_custom_call.1} parent=1 // loop_header
      %s18 = sphi 0, %s22
      %p19 = scmp.ge.s32.totalorder %s18, 10
      %s25 = sphi 0, %s37
      %s26 = sphi 0, %s33
      %s27 = sphi 0, %s25
      %s28 = sphi 0, %s26
      %s29 = sphi 0, %s27
      %s30 = sphi 0, %s28
      %s40 = sphi 0, %s42
      %s43 = sphi 0, %s40
      %s44 = sphi 0, %s43
      %s60 = sphi 0, %s44
      %s64 = sphi 0, %s64
      %s66 = sphi 0, %s64
      %s67 = sphi 0, %s66
      %s81 = sphi 0, %s67
      %s85 = sphi 0, %s85
      %s87 = sphi 0, %s85
      %s88 = sphi 0, %s87
      %s102 = sphi 0, %s88
      %s106 = sphi 0, %s106
      %s108 = sphi 0, %s106
      %s109 = sphi 0, %s108
      %s123 = sphi 0, %s109
      %s127 = sphi 0, %s127
      %s129 = sphi 0, %s127
      %s130 = sphi 0, %s129
      %s144 = sphi 0, %s130
      %s150 = sphi 0, %s152
      %s153 = sphi 0, %s150
      %s154 = sphi 0, %s153
      %s170 = sphi 0, %s154
    $region4: #{tpu_custom_call.1} parent=1 // loop_header_branch
      %21 = sbr.rel (%p19) target = $region8
    $region5: #{tpu_custom_call.1} parent=1 // loop_body
      %s23 = ssub.s32 %s18, 1
      %s24 = ssub.s32 %s18, 2
      %s31 = sadd.s32 1, %s26
      %p32 = scmp.ge.s32.totalorder %s31, 4
      %s33 = scalar_select %p32, 0, %s31
      %s34 = sadd.s32 1, %s25
      %s35 = scalar_select %p32, %s34, %s25
      %p36 = scmp.ge.s32.totalorder %s35, 2
      %s37 = scalar_select %p36, 0, %s35
      %s38 = ssub.s32 %s25, %s37
      %p39 = scmp.eq.s32.totalorder %s38, 0
      %s41 = sadd.s32 %s40, 1
      %s42 = scalar_select %p39, %s40, %s41
      %p45 = pneg %p39
      %p46 = scmp.eq.s32.totalorder %s18, 7
      %p47 = por %p45, %p46
      %p48 = scmp.ne.s32.totalorder %s40, %s43
      %p49 = scmp.eq.s32.totalorder %s18, 0
      %p50 = por %p48, %p49
      %p51 = scmp.ne.s32.totalorder %s40, %s43
      %p52 = scmp.eq.s32.totalorder %s23, 7
      %p53 = por %p51, %p52
      %p54 = scmp.ne.s32.totalorder %s43, %s44
      %p55 = scmp.eq.s32.totalorder %s23, 0
      %p56 = por %p54, %p55
      %p57 = scmp.ne.s32.totalorder %s43, %s44
      %p58 = scmp.eq.s32.totalorder %s24, 7
      %p59 = por %p57, %p58
      %p61 = scmp.ne.s32.totalorder %s44, %s60
      %p62 = scmp.eq.s32.totalorder %s24, 0
      %p63 = por %p61, %p62
      %s65 = sadd.s32 %s64, 1
      %p68 = scmp.eq.s32.totalorder %s18, 7
      %p69 = scmp.ne.s32.totalorder %s64, %s66
      %p70 = scmp.eq.s32.totalorder %s18, 0
      %p71 = por %p69, %p70
      %p72 = scmp.ne.s32.totalorder %s64, %s66
      %p73 = scmp.eq.s32.totalorder %s23, 7
      %p74 = por %p72, %p73
      %p75 = scmp.ne.s32.totalorder %s66, %s67
      %p76 = scmp.eq.s32.totalorder %s23, 0
      %p77 = por %p75, %p76
      %p78 = scmp.ne.s32.totalorder %s66, %s67
      %p79 = scmp.eq.s32.totalorder %s24, 7
      %p80 = por %p78, %p79
      %p82 = scmp.ne.s32.totalorder %s67, %s81
      %p83 = scmp.eq.s32.totalorder %s24, 0
      %p84 = por %p82, %p83
      %s86 = sadd.s32 %s85, 1
      %p89 = scmp.eq.s32.totalorder %s18, 7
      %p90 = scmp.ne.s32.totalorder %s85, %s87
      %p91 = scmp.eq.s32.totalorder %s18, 0
      %p92 = por %p90, %p91
      %p93 = scmp.ne.s32.totalorder %s85, %s87
      %p94 = scmp.eq.s32.totalorder %s23, 7
      %p95 = por %p93, %p94
      %p96 = scmp.ne.s32.totalorder %s87, %s88
      %p97 = scmp.eq.s32.totalorder %s23, 0
      %p98 = por %p96, %p97
      %p99 = scmp.ne.s32.totalorder %s87, %s88
      %p100 = scmp.eq.s32.totalorder %s24, 7
      %p101 = por %p99, %p100
      %p103 = scmp.ne.s32.totalorder %s88, %s102
      %p104 = scmp.eq.s32.totalorder %s24, 0
      %p105 = por %p103, %p104
      %s107 = sadd.s32 %s106, 1
      %p110 = scmp.eq.s32.totalorder %s18, 7
      %p111 = scmp.ne.s32.totalorder %s106, %s108
      %p112 = scmp.eq.s32.totalorder %s18, 0
      %p113 = por %p111, %p112
      %p114 = scmp.ne.s32.totalorder %s106, %s108
      %p115 = scmp.eq.s32.totalorder %s23, 7
      %p116 = por %p114, %p115
      %p117 = scmp.ne.s32.totalorder %s108, %s109
      %p118 = scmp.eq.s32.totalorder %s23, 0
      %p119 = por %p117, %p118
      %p120 = scmp.ne.s32.totalorder %s108, %s109
      %p121 = scmp.eq.s32.totalorder %s24, 7
      %p122 = por %p120, %p121
      %p124 = scmp.ne.s32.totalorder %s109, %s123
      %p125 = scmp.eq.s32.totalorder %s24, 0
      %p126 = por %p124, %p125
      %s128 = sadd.s32 %s127, 1
      %p131 = scmp.eq.s32.totalorder %s18, 7
      %p132 = scmp.ne.s32.totalorder %s127, %s129
      %p133 = scmp.eq.s32.totalorder %s18, 0
      %p134 = por %p132, %p133
      %p135 = scmp.ne.s32.totalorder %s127, %s129
      %p136 = scmp.eq.s32.totalorder %s23, 7
      %p137 = por %p135, %p136
      %p138 = scmp.ne.s32.totalorder %s129, %s130
      %p139 = scmp.eq.s32.totalorder %s23, 0
      %p140 = por %p138, %p139
      %p141 = scmp.ne.s32.totalorder %s129, %s130
      %p142 = scmp.eq.s32.totalorder %s24, 7
      %p143 = por %p141, %p142
      %p145 = scmp.ne.s32.totalorder %s130, %s144
      %p146 = scmp.eq.s32.totalorder %s24, 0
      %p147 = por %p145, %p146
      %s148 = ssub.s32 %s25, %s37
      %p149 = scmp.eq.s32.totalorder %s148, 0
      %s151 = sadd.s32 %s150, 1
      %s152 = scalar_select %p149, %s150, %s151
      %p155 = pneg %p149
      %p156 = scmp.eq.s32.totalorder %s18, 7
      %p157 = por %p155, %p156
      %p158 = scmp.ne.s32.totalorder %s150, %s153
      %p159 = scmp.eq.s32.totalorder %s18, 0
      %p160 = por %p158, %p159
      %p161 = scmp.ne.s32.totalorder %s150, %s153
      %p162 = scmp.eq.s32.totalorder %s23, 7
      %p163 = por %p161, %p162
      %p164 = scmp.ne.s32.totalorder %s153, %s154
      %p165 = scmp.eq.s32.totalorder %s23, 0
      %p166 = por %p164, %p165
      %p167 = scmp.ne.s32.totalorder %s153, %s154
      %p168 = scmp.eq.s32.totalorder %s24, 7
      %p169 = por %p167, %p168
      %p171 = scmp.ne.s32.totalorder %s154, %s170
      %p172 = scmp.eq.s32.totalorder %s24, 0
      %p173 = por %p171, %p172
      %p174 = scmp.le.s32.totalorder 1, %s18
      %p175 = scmp.lt.s32.totalorder %s18, 9
      %p176 = pnand %p174, %p175
      %p177 = pneg %p176
      // Predicated region
      $region9: #{tpu_custom_call.1} parent=5 // pred_check
        _
      $region10: #{tpu_custom_call.1} parent=5 // pred_check_branch
        %179 = sbr.rel (%p176) target = $region12
      $region11: #{tpu_custom_call.1} parent=5 // pred_region
        %s180 = ssub.s32 %s18, 1
        // Predicated region
        $region13: #{tpu_custom_call.1} parent=11 // pred_check
          %p181 = pneg %p77
        $region14: #{tpu_custom_call.1} parent=11 // pred_check_branch
          %183 = sbr.rel (%p181) target = $region16
        $region15: #{tpu_custom_call.1} parent=11 // pred_region
          %s185 = ssub.s32 256, 256
          %186 = vsyncadd [#allocation8], %s185
          %s187 = sshll.u32 [#allocation7], 4
          %s188 = int_to_ptr.vmem [resolvable:$true] %s187
          %193 = dma.hbm_to_vmem [thread:$0]  %s1, 256, %s188, [#allocation8], 64, 64, 4
        $region16: #{tpu_custom_call.1} parent=11 // pred_fallthru
          _
        // Predicated region
        $region17: #{tpu_custom_call.1} parent=11 // pred_check
          %p194 = pneg %p98
        $region18: #{tpu_custom_call.1} parent=11 // pred_check_branch
          %196 = sbr.rel (%p194) target = $region20
        $region19: #{tpu_custom_call.1} parent=11 // pred_region
          _
        $region20: #{tpu_custom_call.1} parent=11 // pred_fallthru
          _
        // Predicated region
        $region21: #{tpu_custom_call.1} parent=11 // pred_check
          %p197 = pneg %p119
        $region22: #{tpu_custom_call.1} parent=11 // pred_check_branch
          %199 = sbr.rel (%p197) target = $region24
        $region23: #{tpu_custom_call.1} parent=11 // pred_region
          %s201 = ssub.s32 256, 256
          %202 = vsyncadd [#allocation8], %s201
          %s203 = sshll.u32 [#allocation9], 4
          %s204 = int_to_ptr.vmem [resolvable:$true] %s203
          %209 = dma.hbm_to_vmem [thread:$0]  %s3, 256, %s204, [#allocation8], 64, 64, 4
        $region24: #{tpu_custom_call.1} parent=11 // pred_fallthru
          _
        // Predicated region
        $region25: #{tpu_custom_call.1} parent=11 // pred_check
          %p210 = pneg %p140
        $region26: #{tpu_custom_call.1} parent=11 // pred_check_branch
          %212 = sbr.rel (%p210) target = $region28
        $region27: #{tpu_custom_call.1} parent=11 // pred_region
          _
        $region28: #{tpu_custom_call.1} parent=11 // pred_fallthru
          _
      $region12: #{tpu_custom_call.1} parent=5 // pred_fallthru
        _
      %p213 = scmp.lt.s32.totalorder %s18, 8
      // Predicated region
      $region29: #{tpu_custom_call.1} parent=5 // pred_check
        %p214 = pneg %p213
      $region30: #{tpu_custom_call.1} parent=5 // pred_check_branch
        %216 = sbr.rel (%p214) target = $region32
      $region31: #{tpu_custom_call.1} parent=5 // pred_region
        // Predicated region
        $region33: #{tpu_custom_call.1} parent=31 // pred_check
          %p217 = pneg %p50
        $region34: #{tpu_custom_call.1} parent=31 // pred_check_branch
          %219 = sbr.rel (%p217) target = $region36
        $region35: #{tpu_custom_call.1} parent=31 // pred_region
          %s220 = sand.u32 %s40, 1
          %s221 = scalar_lea.sflag [#allocation5], %s220
          %s222 = sand.u32 %s40, 1
          %s223 = smul.addr %s222, 4
          %s224 = scalar_lea.vmem [#allocation4], %s223
          %s226 = ssub.s32 64, 64
          %227 = vsyncadd %s221, %s226
          %s228 = smul.addr %s25, 64
          %s229 = scalar_lea.hbm %s0, %s228
          %s231 = sshll.u32 %s224, 4
          %s232 = int_to_ptr.vmem [resolvable:$true] %s231
          %234 = dma.hbm_to_vmem [thread:$0]  %s229, 64, %s232, %s221
        $region36: #{tpu_custom_call.1} parent=31 // pred_fallthru
          _
      $region32: #{tpu_custom_call.1} parent=5 // pred_fallthru
        _
      %p235 = scmp.le.s32.totalorder 1, %s18
      %p236 = scmp.lt.s32.totalorder %s18, 9
      %p237 = pnand %p235, %p236
      %p238 = pneg %p237
      // Predicated region
      $region37: #{tpu_custom_call.1} parent=5 // pred_check
        _
      $region38: #{tpu_custom_call.1} parent=5 // pred_check_branch
        %240 = sbr.rel (%p237) target = $region40
      $region39: #{tpu_custom_call.1} parent=5 // pred_region
        %s241 = ssub.s32 %s18, 1
        %s242 = sand.u32 %s43, 1
        %s243 = scalar_lea.sflag [#allocation5], %s242
        %s244 = sand.u32 %s43, 1
        %s245 = smul.addr %s244, 4
        %s246 = scalar_lea.vmem [#allocation4], %s245
        // Predicated region
        $region41: #{tpu_custom_call.1} parent=39 // pred_check
          %p247 = pneg %p56
        $region42: #{tpu_custom_call.1} parent=39 // pred_check_branch
          %249 = sbr.rel (%p247) target = $region44
        $region43: #{tpu_custom_call.1} parent=39 // pred_region
          %250 = dma.done %s243, 64
        $region44: #{tpu_custom_call.1} parent=39 // pred_fallthru
          _
        // Predicated region
        $region45: #{tpu_custom_call.1} parent=39 // pred_check
          %p251 = pneg %p77
        $region46: #{tpu_custom_call.1} parent=39 // pred_check_branch
          %253 = sbr.rel (%p251) target = $region48
        $region47: #{tpu_custom_call.1} parent=39 // pred_region
          %254 = dma.done [#allocation8], 256
        $region48: #{tpu_custom_call.1} parent=39 // pred_fallthru
          _
        // Predicated region
        $region49: #{tpu_custom_call.1} parent=39 // pred_check
          %p255 = pneg %p119
        $region50: #{tpu_custom_call.1} parent=39 // pred_check_branch
          %257 = sbr.rel (%p255) target = $region52
        $region51: #{tpu_custom_call.1} parent=39 // pred_region
          %258 = dma.done [#allocation8], 256
        $region52: #{tpu_custom_call.1} parent=39 // pred_fallthru
          _
        %s259 = sand.u32 %s43, 1
        %s260 = scalar_lea.sflag [#allocation5], %s259
        %s261 = sand.u32 %s43, 1
        %s262 = smul.addr %s261, 4
        %s263 = scalar_lea.vmem [#allocation4], %s262
        %p264 = pneg %p56
        %p265 = pneg %p53
        %p266 = pneg %p77
        %p267 = pneg %p74
        %p268 = pneg %p98
        %p269 = pneg %p95
        %p270 = pneg %p119
        %p271 = pneg %p116
        %p272 = pneg %p140
        %p273 = pneg %p137
        %p274 = pneg %p166
        %p275 = pneg %p163
        %s276 = sand.u32 %s153, 1
        %s277 = scalar_lea.sflag [#allocation6], %s276
        %s278 = sand.u32 %s153, 1
        %s279 = smul.addr %s278, 8
        %s280 = scalar_lea.vmem [#allocation10], %s279
        %p282 = scmp.eq.s32.totalorder %s28, 0
        // Predicated region
        $region53: #{tpu_custom_call.1} parent=39 // pred_check
          %p283 = pneg %p282
        $region54: #{tpu_custom_call.1} parent=39 // pred_check_branch
          %285 = sbr.rel (%p283) target = $region56
        $region55: #{tpu_custom_call.1} parent=39 // pred_region
          %v286 = vld [vmem:[%s246] sm:$0xf]
          %v287 = vld [vmem:[#allocation7] sm:$0xf]
          %v288 = vld [vmem:[#allocation7 + $0x4] sm:$0xf]
          %v289 = vld [vmem:[#allocation7 + $0x8] sm:$0xf]
          %v290 = vld [vmem:[#allocation7 + $0xc] sm:$0xf]
          %v291 = vld [vmem:[%s2] sm:$0x1]
          %v293 = vlaneseq
          %v294 = vshrl.u32 %v293, 7
          %v295 = vsub.s32 0, %v294
          %v296 = vrot.slane %v291, %v295
          %v302 = vunpack.c.l.b16 %v287
          %v303 = vunpack.c.l.b16 %v288
          %v304 = vunpack.c.l.b16 %v289
          %v305 = vunpack.c.l.b16 %v290
          %v306 = vpack.c.b16 %v303, %v302
          %v307 = vpack.c.b16 %v305, %v304
          %vm310 = vcmask 261120
          %v312 = vsel %vm310, %v286, 0
          %314 = vmatprep.subr.bf16.mxu0 0
          %315 = vmatpush1.bf16.msra.mxu0 %v306
          %316 = vmatprep.subr.bf16.mxu0 0
          %317 = vmatpush1.bf16.msra.mxu0 %v307
          %318 = vmatprep.subr.bf16.mxu0 0
          %319 = vmatpush1.bf16.msra.mxu0 0
          %320 = vmatprep.subr.bf16.mxu0 0
          %321 = vmatpush1.bf16.msra.mxu0 0
          %322 = vmatprep.subr.bf16.mxu0 0
          %323 = vmatpush1.bf16.msra.mxu0 0
          %324 = vmatprep.subr.bf16.mxu0 0
          %325 = vmatpush1.bf16.msra.mxu0 0
          %326 = vmatprep.subr.bf16.mxu0 0
          %327 = vmatpush1.bf16.msra.mxu0 0
          %328 = vmatprep.subr.bf16.mxu0 0
          %329 = vmatpush1.bf16.msra.mxu0 0
          %330 = vmatprep.subr.bf16.mxu0 0
          %331 = vmatpush1.bf16.msra.mxu0 0
          %332 = vmatprep.subr.bf16.mxu0 0
          %333 = vmatpush1.bf16.msra.mxu0 0
          %334 = vmatprep.subr.bf16.mxu0 0
          %335 = vmatpush1.bf16.msra.mxu0 0
          %336 = vmatprep.subr.bf16.mxu0 0
          %337 = vmatpush1.bf16.msra.mxu0 0
          %338 = vmatprep.subr.bf16.mxu0 0
          %339 = vmatpush1.bf16.msra.mxu0 0
          %340 = vmatprep.subr.bf16.mxu0 0
          %341 = vmatpush1.bf16.msra.mxu0 0
          %342 = vmatprep.subr.bf16.mxu0 0
          %343 = vmatpush1.bf16.msra.mxu0 0
          %344 = vmatprep.subr.bf16.mxu0 0
          %345 = vmatpush1.bf16.msra.mxu0 0
          %346 = vmatprep.mubr.bf16.mxu0 0
          %347 = vmatmul.mubr.bf16.gmra.mrb[0].mxu0 %v312
          %v348 = vpop.f32.mrb[0].mxu0
          %v349 = vadd.f32 %v296, %v348
          %v350 = vpop.f32.mrb[0].mxu0
          %v351 = vpop.f32.mrb[0].mxu0
          %v352 = vpop.f32.mrb[0].mxu0
          %353 = vdwg.mxu0
          %v354 = vpack.c.bf16 %v349, %v349
          %vm355 = vcmask 60416
          %356 = vst.msk [vmem:[#allocation2] sm:$0xf] %vm355, %v354
          %v358 = vunpack.c.l.b16 %v354
          %v359 = vpack.c.b16 %v358, %v358
          %360 = vrot.lane.b32.xlu0 %v359, 120
          %v361 = vpop.permute.xlu0 %360
          %s363 = scalar_lea.vmem [#allocation2], 4
          %364 = vst.msk [vmem:[%s363] sm:$0xf] %vm355, %v361
          %365 = vrot.lane.b32.xlu0 %v359, 112
          %v366 = vpop.permute.xlu0 %365
          %s368 = scalar_lea.vmem [#allocation2], 8
          %369 = vst.msk [vmem:[%s368] sm:$0xf] %vm355, %v366
          %370 = vrot.lane.b32.xlu0 %v359, 104
          %v371 = vpop.permute.xlu0 %370
          %s373 = scalar_lea.vmem [#allocation2], 12
          %374 = vst.msk [vmem:[%s373] sm:$0xf] %vm355, %v371
          %375 = vrot.lane.b32.xlu0 %v359, 96
          %v376 = vpop.permute.xlu0 %375
          %s378 = scalar_lea.vmem [#allocation2], 16
          %379 = vst.msk [vmem:[%s378] sm:$0xf] %vm355, %v376
          %380 = vrot.lane.b32.xlu0 %v359, 88
          %v381 = vpop.permute.xlu0 %380
          %s383 = scalar_lea.vmem [#allocation2], 20
          %384 = vst.msk [vmem:[%s383] sm:$0xf] %vm355, %v381
          %385 = vrot.lane.b32.xlu0 %v359, 80
          %v386 = vpop.permute.xlu0 %385
          %s388 = scalar_lea.vmem [#allocation2], 24
          %389 = vst.msk [vmem:[%s388] sm:$0xf] %vm355, %v386
          %390 = vrot.lane.b32.xlu0 %v359, 72
          %v391 = vpop.permute.xlu0 %390
          %s393 = scalar_lea.vmem [#allocation2], 28
          %394 = vst.msk [vmem:[%s393] sm:$0xf] %vm355, %v391
          %395 = vrot.lane.b32.xlu0 %v359, 64
          %v396 = vpop.permute.xlu0 %395
          %s398 = scalar_lea.vmem [#allocation2], 32
          %399 = vst.msk [vmem:[%s398] sm:$0xf] %vm355, %v396
          %400 = vrot.lane.b32.xlu0 %v359, 56
          %v401 = vpop.permute.xlu0 %400
          %s403 = scalar_lea.vmem [#allocation2], 36
          %404 = vst.msk [vmem:[%s403] sm:$0xf] %vm355, %v401
          %405 = vrot.lane.b32.xlu0 %v359, 48
          %v406 = vpop.permute.xlu0 %405
          %s408 = scalar_lea.vmem [#allocation2], 40
          %409 = vst.msk [vmem:[%s408] sm:$0xf] %vm355, %v406
          %410 = vrot.lane.b32.xlu0 %v359, 40
          %v411 = vpop.permute.xlu0 %410
          %s413 = scalar_lea.vmem [#allocation2], 44
          %414 = vst.msk [vmem:[%s413] sm:$0xf] %vm355, %v411
          %v415 = vld [vmem:[%s4] sm:$0x1]
          %v417 = vlaneseq
          %v418 = vshrl.u32 %v417, 7
          %v419 = vsub.s32 0, %v418
          %v420 = vrot.slane %v415, %v419
          %422 = vst.msk [vmem:[#allocation3] sm:$0xff] %vm310, %v420
        $region56: #{tpu_custom_call.1} parent=39 // pred_fallthru
          _
        %s423 = smul.addr %s28, 4
        %s424 = scalar_lea.vmem [#allocation2], %s423
        %v425 = vld [vmem:[%s424] sm:$0xf]
        %s426 = sadd.s32 %s28, 4
        %s427 = smul.addr %s426, 4
        %s428 = scalar_lea.vmem [#allocation2], %s427
        %v429 = vld [vmem:[%s428] sm:$0xf]
        %s430 = sadd.s32 %s28, 8
        %s431 = smul.addr %s430, 4
        %s432 = scalar_lea.vmem [#allocation2], %s431
        %v433 = vld [vmem:[%s432] sm:$0xf]
        %vm434 = vcmask 64512
        %v436 = vsel %vm434, %v425, 0
        %v439 = vsel %vm434, %v429, 0
        %441 = vmatprep.subr.bf16.mxu0 0
        %442 = vmatpush1.bf16.xpose.msra.mxu0 %v439
        %443 = vmatprep.subr.bf16.mxu0 0
        %444 = vmatpush1.bf16.xpose.msra.mxu0 0
        %445 = vmatprep.subr.bf16.mxu0 0
        %446 = vmatpush1.bf16.xpose.msra.mxu0 0
        %447 = vmatprep.subr.bf16.mxu0 0
        %448 = vmatpush1.bf16.xpose.msra.mxu0 0
        %449 = vmatprep.subr.bf16.mxu0 0
        %450 = vmatpush1.bf16.xpose.msra.mxu0 0
        %451 = vmatprep.subr.bf16.mxu0 0
        %452 = vmatpush1.bf16.xpose.msra.mxu0 0
        %453 = vmatprep.subr.bf16.mxu0 0
        %454 = vmatpush1.bf16.xpose.msra.mxu0 0
        %455 = vmatprep.subr.bf16.mxu0 0
        %456 = vmatpush1.bf16.xpose.msra.mxu0 0
        %457 = vmatprep.subr.bf16.mxu0 0
        %458 = vmatpush1.bf16.xpose.msra.mxu0 0
        %459 = vmatprep.subr.bf16.mxu0 0
        %460 = vmatpush1.bf16.xpose.msra.mxu0 0
        %461 = vmatprep.subr.bf16.mxu0 0
        %462 = vmatpush1.bf16.xpose.msra.mxu0 0
        %463 = vmatprep.subr.bf16.mxu0 0
        %464 = vmatpush1.bf16.xpose.msra.mxu0 0
        %465 = vmatprep.subr.bf16.mxu0 0
        %466 = vmatpush1.bf16.xpose.msra.mxu0 0
        %467 = vmatprep.subr.bf16.mxu0 0
        %468 = vmatpush1.bf16.xpose.msra.mxu0 0
        %469 = vmatprep.subr.bf16.mxu0 0
        %470 = vmatpush1.bf16.xpose.msra.mxu0 0
        %471 = vmatprep.subr.bf16.mxu0 0
        %472 = vmatpush1.bf16.xpose.msra.mxu0 0
        %473 = vmatprep.mubr.bf16.mxu0 0
        %474 = vmatmul.mubr.bf16.gmra.mrb[0].mxu0 %v436
        %v475 = vpop.f32.mrb[0].mxu0
        %v476 = vadd.f32 0.0, %v475
        %v477 = vpop.f32.mrb[0].mxu0
        %v478 = vpop.f32.mrb[0].mxu0
        %v479 = vpop.f32.mrb[0].mxu0
        %480 = vdwg.mxu0
        %v481 = vsel %vm434, %v476, -inf
        %482 = vmax.xlane.f32.xlu0 %v481
        %v483 = vpop.xlane.xlu0 %482
        %v484 = vsub.f32 %v476, %v483
        %v485 = vmul.f32 %v484, 1.442695
        %v486 = vpow.pop %v485
        %v487 = vsel %vm434, %v486, 0.0
        %488 = vadd.xlane.f32.xlu0 %v487
        %v489 = vpop.xlane.xlu0 %488
        %v490 = vrcp.pop %v489
        %v491 = vmul.f32 %v486, %v490
        %v492 = vpack.c.bf16 %v491, %v491
        %v494 = vsel %vm434, %v492, 0
        %vm496 = vcmask 1043456
        %v498 = vsel %vm496, %v433, 0
        %500 = vmatprep.subr.bf16.mxu0 0
        %501 = vmatpush1.bf16.msra.mxu0 %v498
        %502 = vmatprep.subr.bf16.mxu0 0
        %503 = vmatpush1.bf16.msra.mxu0 0
        %504 = vmatprep.subr.bf16.mxu0 0
        %505 = vmatpush1.bf16.msra.mxu0 0
        %506 = vmatprep.subr.bf16.mxu0 0
        %507 = vmatpush1.bf16.msra.mxu0 0
        %508 = vmatprep.subr.bf16.mxu0 0
        %509 = vmatpush1.bf16.msra.mxu0 0
        %510 = vmatprep.subr.bf16.mxu0 0
        %511 = vmatpush1.bf16.msra.mxu0 0
        %512 = vmatprep.subr.bf16.mxu0 0
        %513 = vmatpush1.bf16.msra.mxu0 0
        %514 = vmatprep.subr.bf16.mxu0 0
        %515 = vmatpush1.bf16.msra.mxu0 0
        %516 = vmatprep.subr.bf16.mxu0 0
        %517 = vmatpush1.bf16.msra.mxu0 0
        %518 = vmatprep.subr.bf16.mxu0 0
        %519 = vmatpush1.bf16.msra.mxu0 0
        %520 = vmatprep.subr.bf16.mxu0 0
        %521 = vmatpush1.bf16.msra.mxu0 0
        %522 = vmatprep.subr.bf16.mxu0 0
        %523 = vmatpush1.bf16.msra.mxu0 0
        %524 = vmatprep.subr.bf16.mxu0 0
        %525 = vmatpush1.bf16.msra.mxu0 0
        %526 = vmatprep.subr.bf16.mxu0 0
        %527 = vmatpush1.bf16.msra.mxu0 0
        %528 = vmatprep.subr.bf16.mxu0 0
        %529 = vmatpush1.bf16.msra.mxu0 0
        %530 = vmatprep.subr.bf16.mxu0 0
        %531 = vmatpush1.bf16.msra.mxu0 0
        %532 = vmatprep.mubr.bf16.mxu0 0
        %533 = vmatmul.mubr.bf16.gmra.mrb[0].mxu0 %v494
        %v534 = vpop.f32.mrb[0].mxu0
        %v535 = vadd.f32 0.0, %v534
        %v536 = vpop.f32.mrb[0].mxu0
        %v537 = vpop.f32.mrb[0].mxu0
        %v538 = vpop.f32.mrb[0].mxu0
        %539 = vdwg.mxu0
        %s540 = smul.u32 %s28, 8
        %s541 = sshra.s32 %s540, 3
        %s542 = sand.u32 %s540, 7
        %s543 = smul.addr %s541, 4
        %s544 = scalar_lea.vmem [#allocation9], %s543
        %v545 = vld [vmem:[%s544] sm:$0xf]
        %v546 = vld [vmem:[#allocation3] sm:$0xff]
        %v547 = vpack.c.bf16 %v535, %v535
        %v549 = vsel %vm434, %v547, 0
        %v552 = vsel %vm496, %v545, 0
        %554 = vmatprep.subr.bf16.mxu0 0
        %555 = vmatpush1.bf16.msra.mxu0 %v552
        %556 = vmatprep.subr.bf16.mxu0 0
        %557 = vmatpush1.bf16.msra.mxu0 0
        %558 = vmatprep.subr.bf16.mxu0 0
        %559 = vmatpush1.bf16.msra.mxu0 0
        %560 = vmatprep.subr.bf16.mxu0 0
        %561 = vmatpush1.bf16.msra.mxu0 0
        %562 = vmatprep.subr.bf16.mxu0 0
        %563 = vmatpush1.bf16.msra.mxu0 0
        %564 = vmatprep.subr.bf16.mxu0 0
        %565 = vmatpush1.bf16.msra.mxu0 0
        %566 = vmatprep.subr.bf16.mxu0 0
        %567 = vmatpush1.bf16.msra.mxu0 0
        %568 = vmatprep.subr.bf16.mxu0 0
        %569 = vmatpush1.bf16.msra.mxu0 0
        %570 = vmatprep.subr.bf16.mxu0 0
        %571 = vmatpush1.bf16.msra.mxu0 0
        %572 = vmatprep.subr.bf16.mxu0 0
        %573 = vmatpush1.bf16.msra.mxu0 0
        %574 = vmatprep.subr.bf16.mxu0 0
        %575 = vmatpush1.bf16.msra.mxu0 0
        %576 = vmatprep.subr.bf16.mxu0 0
        %577 = vmatpush1.bf16.msra.mxu0 0
        %578 = vmatprep.subr.bf16.mxu0 0
        %579 = vmatpush1.bf16.msra.mxu0 0
        %580 = vmatprep.subr.bf16.mxu0 0
        %581 = vmatpush1.bf16.msra.mxu0 0
        %582 = vmatprep.subr.bf16.mxu0 0
        %583 = vmatpush1.bf16.msra.mxu0 0
        %584 = vmatprep.subr.bf16.mxu0 0
        %585 = vmatpush1.bf16.msra.mxu0 0
        %586 = vmatprep.mubr.bf16.mxu0 0
        %587 = vmatmul.mubr.bf16.gmra.mrb[0].mxu0 %v549
        %v588 = vpop.f32.mrb[0].mxu0
        %v589 = vadd.f32 0.0, %v588
        %v590 = vpop.f32.mrb[0].mxu0
        %v591 = vpop.f32.mrb[0].mxu0
        %v592 = vpop.f32.mrb[0].mxu0
        %593 = vdwg.mxu0
        %v594 = vadd.f32 %v546, %v589
        %vm595 = vcmask 261120
        %596 = vst.msk [vmem:[#allocation3] sm:$0xff] %vm595, %v594
        %p597 = scmp.eq.s32.totalorder %s28, 3
        // Predicated region
        $region57: #{tpu_custom_call.1} parent=39 // pred_check
          %p598 = pneg %p597
        $region58: #{tpu_custom_call.1} parent=39 // pred_check_branch
          %600 = sbr.rel (%p598) target = $region60
        $region59: #{tpu_custom_call.1} parent=39 // pred_region
          %v601 = vld [vmem:[#allocation3] sm:$0xff]
          %602 = vst.msk [vmem:[%s280] sm:$0xff] %vm595, %v601
        $region60: #{tpu_custom_call.1} parent=39 // pred_fallthru
          _
        %s603 = sand.u32 %s153, 1
        %s604 = scalar_lea.sflag [#allocation6], %s603
        %s605 = sand.u32 %s153, 1
        %s606 = smul.addr %s605, 8
        %s607 = scalar_lea.vmem [#allocation10], %s606
        // Predicated region
        $region61: #{tpu_custom_call.1} parent=39 // pred_check
          %p608 = pneg %p163
        $region62: #{tpu_custom_call.1} parent=39 // pred_check_branch
          %610 = sbr.rel (%p608) target = $region64
        $region63: #{tpu_custom_call.1} parent=39 // pred_region
          %s612 = ssub.s32 128, 128
          %613 = vsyncadd %s604, %s612
          %s614 = smul.addr %s27, 128
          %s615 = scalar_lea.hbm %s5, %s614
          %s617 = sshll.u32 %s607, 4
          %s618 = int_to_ptr.vmem [resolvable:$true] %s617
          %620 = dma.vmem_to_hbm [thread:$0]  %s618, 128, %s615, %s604
        $region64: #{tpu_custom_call.1} parent=39 // pred_fallthru
          _
      $region40: #{tpu_custom_call.1} parent=5 // pred_fallthru
        _
      %p621 = scmp.le.s32.totalorder 2, %s18
      // Predicated region
      $region65: #{tpu_custom_call.1} parent=5 // pred_check
        %p622 = pneg %p621
      $region66: #{tpu_custom_call.1} parent=5 // pred_check_branch
        %624 = sbr.rel (%p622) target = $region68
      $region67: #{tpu_custom_call.1} parent=5 // pred_region
        %s625 = ssub.s32 %s18, 2
        // Predicated region
        $region69: #{tpu_custom_call.1} parent=67 // pred_check
          %p626 = pneg %p169
        $region70: #{tpu_custom_call.1} parent=67 // pred_check_branch
          %628 = sbr.rel (%p626) target = $region72
        $region71: #{tpu_custom_call.1} parent=67 // pred_region
          %s629 = sand.u32 %s154, 1
          %s630 = scalar_lea.sflag [#allocation6], %s629
          %s631 = sand.u32 %s154, 1
          %s632 = smul.addr %s631, 8
          %s633 = scalar_lea.vmem [#allocation10], %s632
          %634 = dma.done %s630, 128
        $region72: #{tpu_custom_call.1} parent=67 // pred_fallthru
          _
      $region68: #{tpu_custom_call.1} parent=5 // pred_fallthru
        _
    $region6: #{tpu_custom_call.1} parent=1 // loop_footer
      %s22 = sadd.s32 1, %s18
    $region7: #{tpu_custom_call.1} parent=1 // loop_footer_branch
      %17 = sbr.rel target = $region3
    $region8: #{tpu_custom_call.1} parent=1 // loop_exit
      _
    %635 = vsyncpa [#allocation5], 1
    %s636 = scalar_lea.sflag [#allocation5], 1
    %637 = vsyncpa %s636, 1
    %638 = vsyncpa [#allocation8], 1
    %639 = vsyncpa [#allocation6], 1
    %s640 = scalar_lea.sflag [#allocation6], 1
    %641 = vsyncpa %s640, 1

</llo_original>
